<compile_context>
chip_gen: v5e
topology: v5e:2x2
jax: 0.10.0
libtpu: 0.0.40
codegen_flags: <defaults>
</compile_context>

<pallas_src>
import numpy as np
import jax
import jax.numpy as jnp
from jax import lax
from jax.experimental import pallas as pl
from jax.experimental.pallas import tpu as pltpu


def _tri_pairs(D):
    """Upper-triangle (i, j) pairs, i <= j, row-major."""
    return [(i, j) for i in range(D) for j in range(i, D)]


def _make_kl_mv_kernel(D, chunk, n_chunks):
    pairs = _tri_pairs(D)
    row_of = {p: D + r for r, p in enumerate(pairs)}   # slab row of triangle entry
    n_rows = D + len(pairs)

    def kernel(data_ref, out_ref):
        # data_ref : (n_rows, TILE_S, 128)  rows [0, D) = diff, rest = inv_cov triangle
        # out_ref  : (TILE_S, 128) f32
        def body(c, carry):
            off = pl.multiple_of(c * chunk, chunk)
            rows = [data_ref[r, pl.ds(off, chunk), :].astype(jnp.float32)
                    for r in range(n_rows)]                       # each (chunk, 128)
            d = rows[:D]
            a = {p: rows[row_of[p]] for p in pairs}

            # Mahalanobis term using symmetry: diag + 2 * upper off-diagonal.
            quad = d[0] * d[0] * a[(0, 0)]
            for i in range(D):
                for j in range(i, D):
                    if i == 0 and j == 0:
                        continue
                    t = d[i] * d[j] * a[(i, j)]
                    quad = quad + (t if i == j else 2.0 * t)

            # logdet(inv_cov) via unrolled symmetric (LDL^T-style) elimination on the
            # upper triangle.  Assumes SPD inv_cov (no pivoting); padded lanes hold the
            # identity so they stay finite.
            piv_prod = a[(0, 0)]
            for k in range(D):
                piv = a[(k, k)]
                if k > 0:
                    piv_prod = piv_prod * piv
                if k + 1 < D:
                    # Exact divide kept on purpose: kernel is HBM-bound with VALU slack,
                    # and it keeps the logdet numerically tight.
                    inv_piv = 1.0 / piv
                    for i in range(k + 1, D):
                        f = a[(k, i)] * inv_piv
                        for j in range(i, D):
                            a[(i, j)] = a[(i, j)] - f * a[(k, j)]
            logdet = jnp.log(piv_prod)

            out_ref[pl.ds(off, chunk), :] = (0.5 * (quad - logdet)).astype(out_ref.dtype)
            return carry

        lax.fori_loop(0, n_chunks, body, None, unroll=min(2, n_chunks))

    return kernel


def _kl_loss_mv_elementwise(pred, target, inv_cov):
    """Per-sample KL loss. pred/target: (N, D), inv_cov: (N, D, D) SPD. Returns (N,) f32."""
    N, D = pred.shape
    if N == 0:
        return jnp.zeros((0,), jnp.float32)

    pairs = _tri_pairs(D)
    n_tri = len(pairs)
    n_rows = D + n_tri
    tri_cols = np.array([i * D + j for (i, j) in pairs], dtype=np.int32)

    # ---- single-pass prologue: diff + triangle slice, source dtype (no forced f32) ----
    diff = pred - target                                       # (N, D)
    tri = inv_cov.reshape(N, D * D)[:, tri_cols]               # (N, n_tri) static cols
    slab_dt = jnp.result_type(diff.dtype, tri.dtype)
    data = jnp.concatenate([diff.astype(slab_dt), tri.astype(slab_dt)], axis=1)  # (N, n_rows)

    itemsize = jnp.dtype(slab_dt).itemsize
    chunk = max(8, 32 // itemsize)                 # 8 for f32, 16 for bf16/f16 (sublane packing)
    s_total = pl.cdiv(N, 128)                      # lane-rows of 128 samples
    tile_s = min(512, pl.cdiv(s_total, chunk) * chunk)   # up to 64K samples per grid step
    s_pad = pl.cdiv(s_total, tile_s) * tile_s
    n_total = s_pad * 128

    if n_total > N:
        # Padded samples: diff = 0, inv_cov = identity -> finite loss (= 0) in padded lanes.
        pad_row = np.zeros((n_rows,), dtype=np.float32)
        for r, (i, j) in enumerate(pairs):
            if i == j:
                pad_row[D + r] = 1.0
        pad_blk = jnp.broadcast_to(jnp.asarray(pad_row, dtype=slab_dt),
                                   (n_total - N, n_rows))
        data = jnp.concatenate([data, pad_blk], axis=0)

    # Samples -> lanes: slab[r, s, l] = data[s*128 + l, r]
    slab = data.reshape(s_pad, 128, n_rows).transpose(2, 0, 1)   # (n_rows, s_pad, 128)

    n_chunks = tile_s // chunk
    cost = pl.CostEstimate(
        flops=int(n_total) * (4 * n_tri + (2 * D * D * D) // 3 + 2 * D),
        transcendentals=int(n_total) * D,
        bytes_accessed=int(n_total) * (n_rows * itemsize + 4),
    )

    out = pl.pallas_call(
        _make_kl_mv_kernel(D, chunk, n_chunks),
        out_shape=jax.ShapeDtypeStruct((s_pad, 128), jnp.float32),
        grid=(s_pad // tile_s,),
        in_specs=[pl.BlockSpec((n_rows, tile_s, 128), lambda i: (0, i, 0))],
        out_specs=pl.BlockSpec((tile_s, 128), lambda i: (i, 0)),
        compiler_params=pltpu.CompilerParams(dimension_semantics=("parallel",)),
        cost_estimate=cost,
    )(slab)

    return out.reshape(-1)[:N]


def _weight_reduce_loss(loss, weight=None, reduction='mean', avg_factor=None):
    # TODO(synk): for 'mean'/'sum' an in-kernel masked partial reduction would save the
    #             (1, n_pad) write + XLA re-reduce; kept in XLA for weight/'none' generality.
    if weight is not None:
        loss = loss * weight
    if avg_factor is None:
        if reduction == 'mean':
            return loss.mean()
        if reduction == 'sum':
            return loss.sum()
        return loss
    if reduction == 'mean':
        return loss.sum() / avg_factor
    if reduction == 'none':
        return loss
    raise ValueError('avg_factor can not be used with reduction="sum"')


def kl_loss_mv(pred, target, weight=None, inv_cov=None, reduction='mean',
               avg_factor=None):
    assert inv_cov is not None
    loss = _kl_loss_mv_elementwise(pred, target, inv_cov)
    return _weight_reduce_loss(loss, weight, reduction, avg_factor)


class KLLossMV:
    """JAX/Pallas port of MonoRUn's KLLossMV (no learnable parameters)."""

    def __init__(self, reduction='mean', loss_weight=1.0):
        self.reduction = reduction
        self.loss_weight = loss_weight

    def __call__(self, pred, target, inv_cov=None, weight=None, avg_factor=None,
                 reduction_override=None, **kwargs):
        assert reduction_override in (None, 'none', 'mean', 'sum')
        reduction = reduction_override if reduction_override else self.reduction
        return self.loss_weight * kl_loss_mv(
            pred, target, weight, inv_cov=inv_cov, reduction=reduction,
            avg_factor=avg_factor)

    forward = __call__


if __name__ == "__main__":
    key = jax.random.PRNGKey(0)
    N, D = 256, 4
    k1, k2, k3 = jax.random.split(key, 3)

    pred = jax.random.normal(k1, (N, D), dtype=jnp.float32)
    target = jax.random.normal(k2, (N, D), dtype=jnp.float32)
    # per-sample SPD inverse-covariance matrices
    m = jax.random.normal(k3, (N, D, D), dtype=jnp.float32)
    inv_cov = jnp.einsum('nij,nkj->nik', m, m) + 0.5 * jnp.eye(D, dtype=jnp.float32)

    loss_mod = KLLossMV(reduction='mean', loss_weight=1.0)
    out = loss_mod(pred, target, inv_cov=inv_cov)
    out = jax.block_until_ready(out)

    # pure-JAX reference check
    diff = pred - target
    ref_elem = (0.5 * jnp.einsum('ni,nij,nj->n', diff, inv_cov, diff)
                - 0.5 * jnp.linalg.slogdet(inv_cov)[1])
    ref = ref_elem.mean()
    assert jnp.isfinite(out)
    assert jnp.allclose(out, ref, rtol=1e-3, atol=1e-3), (out, ref)

    # also check elementwise ('none') path
    out_none = loss_mod(pred, target, inv_cov=inv_cov, reduction_override='none')
    out_none = jax.block_until_ready(out_none)
    assert jnp.allclose(out_none, ref_elem, rtol=1e-3, atol=1e-3)

    print("KERNEL_OK")
</pallas_src>

<mosaic_0001>
module attributes {stable_mosaic.version = 11 : i64} {
  func.func @kernel(%arg0: i32, %arg1: memref<14x8x128xf32, #tpu.memory_space<vmem>>, %arg2: memref<8x128xf32, #tpu.memory_space<vmem>>) attributes {dimension_semantics = [#tpu.dimension_semantics<parallel>], iteration_bounds = array<i64: 1>, scalar_prefetch = 0 : i64, scratch_operands = 0 : i64, tpu.core_type = #tpu.core_type<tc>, window_params = [{transform_indices = @transform_0, window_bounds = array<i64: 14, 8, 128>}, {transform_indices = @transform_1, window_bounds = array<i64: 8, 128>}]} {
    %c0_i32 = arith.constant 0 : i32
    %c8_i32 = arith.constant 8 : i32
    %0 = arith.muli %c0_i32, %c8_i32 : i32
    %1 = tpu.assume_multiple %0, 8 : i32
    %c0 = arith.constant 0 : index
    %2 = arith.index_cast %1 : i32 to index
    %c0_0 = arith.constant 0 : index
    %3 = vector.load %arg1[%c0, %2, %c0_0] : memref<14x8x128xf32, #tpu.memory_space<vmem>>, vector<1x8x128xf32>
    %4 = vector.shape_cast %3 : vector<1x8x128xf32> to vector<8x128xf32>
    %c1 = arith.constant 1 : index
    %5 = arith.index_cast %1 : i32 to index
    %c0_1 = arith.constant 0 : index
    %6 = vector.load %arg1[%c1, %5, %c0_1] : memref<14x8x128xf32, #tpu.memory_space<vmem>>, vector<1x8x128xf32>
    %7 = vector.shape_cast %6 : vector<1x8x128xf32> to vector<8x128xf32>
    %c2 = arith.constant 2 : index
    %8 = arith.index_cast %1 : i32 to index
    %c0_2 = arith.constant 0 : index
    %9 = vector.load %arg1[%c2, %8, %c0_2] : memref<14x8x128xf32, #tpu.memory_space<vmem>>, vector<1x8x128xf32>
    %10 = vector.shape_cast %9 : vector<1x8x128xf32> to vector<8x128xf32>
    %c3 = arith.constant 3 : index
    %11 = arith.index_cast %1 : i32 to index
    %c0_3 = arith.constant 0 : index
    %12 = vector.load %arg1[%c3, %11, %c0_3] : memref<14x8x128xf32, #tpu.memory_space<vmem>>, vector<1x8x128xf32>
    %13 = vector.shape_cast %12 : vector<1x8x128xf32> to vector<8x128xf32>
    %c4 = arith.constant 4 : index
    %14 = arith.index_cast %1 : i32 to index
    %c0_4 = arith.constant 0 : index
    %15 = vector.load %arg1[%c4, %14, %c0_4] : memref<14x8x128xf32, #tpu.memory_space<vmem>>, vector<1x8x128xf32>
    %16 = vector.shape_cast %15 : vector<1x8x128xf32> to vector<8x128xf32>
    %c5 = arith.constant 5 : index
    %17 = arith.index_cast %1 : i32 to index
    %c0_5 = arith.constant 0 : index
    %18 = vector.load %arg1[%c5, %17, %c0_5] : memref<14x8x128xf32, #tpu.memory_space<vmem>>, vector<1x8x128xf32>
    %19 = vector.shape_cast %18 : vector<1x8x128xf32> to vector<8x128xf32>
    %c6 = arith.constant 6 : index
    %20 = arith.index_cast %1 : i32 to index
    %c0_6 = arith.constant 0 : index
    %21 = vector.load %arg1[%c6, %20, %c0_6] : memref<14x8x128xf32, #tpu.memory_space<vmem>>, vector<1x8x128xf32>
    %22 = vector.shape_cast %21 : vector<1x8x128xf32> to vector<8x128xf32>
    %c7 = arith.constant 7 : index
    %23 = arith.index_cast %1 : i32 to index
    %c0_7 = arith.constant 0 : index
    %24 = vector.load %arg1[%c7, %23, %c0_7] : memref<14x8x128xf32, #tpu.memory_space<vmem>>, vector<1x8x128xf32>
    %25 = vector.shape_cast %24 : vector<1x8x128xf32> to vector<8x128xf32>
    %c8 = arith.constant 8 : index
    %26 = arith.index_cast %1 : i32 to index
    %c0_8 = arith.constant 0 : index
    %27 = vector.load %arg1[%c8, %26, %c0_8] : memref<14x8x128xf32, #tpu.memory_space<vmem>>, vector<1x8x128xf32>
    %28 = vector.shape_cast %27 : vector<1x8x128xf32> to vector<8x128xf32>
    %c9 = arith.constant 9 : index
    %29 = arith.index_cast %1 : i32 to index
    %c0_9 = arith.constant 0 : index
    %30 = vector.load %arg1[%c9, %29, %c0_9] : memref<14x8x128xf32, #tpu.memory_space<vmem>>, vector<1x8x128xf32>
    %31 = vector.shape_cast %30 : vector<1x8x128xf32> to vector<8x128xf32>
    %c10 = arith.constant 10 : index
    %32 = arith.index_cast %1 : i32 to index
    %c0_10 = arith.constant 0 : index
    %33 = vector.load %arg1[%c10, %32, %c0_10] : memref<14x8x128xf32, #tpu.memory_space<vmem>>, vector<1x8x128xf32>
    %34 = vector.shape_cast %33 : vector<1x8x128xf32> to vector<8x128xf32>
    %c11 = arith.constant 11 : index
    %35 = arith.index_cast %1 : i32 to index
    %c0_11 = arith.constant 0 : index
    %36 = vector.load %arg1[%c11, %35, %c0_11] : memref<14x8x128xf32, #tpu.memory_space<vmem>>, vector<1x8x128xf32>
    %37 = vector.shape_cast %36 : vector<1x8x128xf32> to vector<8x128xf32>
    %c12 = arith.constant 12 : index
    %38 = arith.index_cast %1 : i32 to index
    %c0_12 = arith.constant 0 : index
    %39 = vector.load %arg1[%c12, %38, %c0_12] : memref<14x8x128xf32, #tpu.memory_space<vmem>>, vector<1x8x128xf32>
    %40 = vector.shape_cast %39 : vector<1x8x128xf32> to vector<8x128xf32>
    %c13 = arith.constant 13 : index
    %41 = arith.index_cast %1 : i32 to index
    %c0_13 = arith.constant 0 : index
    %42 = vector.load %arg1[%c13, %41, %c0_13] : memref<14x8x128xf32, #tpu.memory_space<vmem>>, vector<1x8x128xf32>
    %43 = vector.shape_cast %42 : vector<1x8x128xf32> to vector<8x128xf32>
    %44 = arith.mulf %4, %4 : vector<8x128xf32>
    %45 = arith.mulf %44, %16 : vector<8x128xf32>
    %46 = arith.mulf %4, %7 : vector<8x128xf32>
    %47 = arith.mulf %46, %19 : vector<8x128xf32>
    %cst = arith.constant 2.000000e+00 : f32
    %48 = vector.broadcast %cst : f32 to vector<8x128xf32>
    %49 = arith.mulf %48, %47 : vector<8x128xf32>
    %50 = arith.addf %45, %49 : vector<8x128xf32>
    %51 = arith.mulf %4, %10 : vector<8x128xf32>
    %52 = arith.mulf %51, %22 : vector<8x128xf32>
    %cst_14 = arith.constant 2.000000e+00 : f32
    %53 = vector.broadcast %cst_14 : f32 to vector<8x128xf32>
    %54 = arith.mulf %53, %52 : vector<8x128xf32>
    %55 = arith.addf %50, %54 : vector<8x128xf32>
    %56 = arith.mulf %4, %13 : vector<8x128xf32>
    %57 = arith.mulf %56, %25 : vector<8x128xf32>
    %cst_15 = arith.constant 2.000000e+00 : f32
    %58 = vector.broadcast %cst_15 : f32 to vector<8x128xf32>
    %59 = arith.mulf %58, %57 : vector<8x128xf32>
    %60 = arith.addf %55, %59 : vector<8x128xf32>
    %61 = arith.mulf %7, %7 : vector<8x128xf32>
    %62 = arith.mulf %61, %28 : vector<8x128xf32>
    %63 = arith.addf %60, %62 : vector<8x128xf32>
    %64 = arith.mulf %7, %10 : vector<8x128xf32>
    %65 = arith.mulf %64, %31 : vector<8x128xf32>
    %cst_16 = arith.constant 2.000000e+00 : f32
    %66 = vector.broadcast %cst_16 : f32 to vector<8x128xf32>
    %67 = arith.mulf %66, %65 : vector<8x128xf32>
    %68 = arith.addf %63, %67 : vector<8x128xf32>
    %69 = arith.mulf %7, %13 : vector<8x128xf32>
    %70 = arith.mulf %69, %34 : vector<8x128xf32>
    %cst_17 = arith.constant 2.000000e+00 : f32
    %71 = vector.broadcast %cst_17 : f32 to vector<8x128xf32>
    %72 = arith.mulf %71, %70 : vector<8x128xf32>
    %73 = arith.addf %68, %72 : vector<8x128xf32>
    %74 = arith.mulf %10, %10 : vector<8x128xf32>
    %75 = arith.mulf %74, %37 : vector<8x128xf32>
    %76 = arith.addf %73, %75 : vector<8x128xf32>
    %77 = arith.mulf %10, %13 : vector<8x128xf32>
    %78 = arith.mulf %77, %40 : vector<8x128xf32>
    %cst_18 = arith.constant 2.000000e+00 : f32
    %79 = vector.broadcast %cst_18 : f32 to vector<8x128xf32>
    %80 = arith.mulf %79, %78 : vector<8x128xf32>
    %81 = arith.addf %76, %80 : vector<8x128xf32>
    %82 = arith.mulf %13, %13 : vector<8x128xf32>
    %83 = arith.mulf %82, %43 : vector<8x128xf32>
    %84 = arith.addf %81, %83 : vector<8x128xf32>
    %cst_19 = arith.constant 1.000000e+00 : f32
    %85 = vector.broadcast %cst_19 : f32 to vector<8x128xf32>
    %86 = arith.divf %85, %16 : vector<8x128xf32>
    %87 = arith.mulf %19, %86 : vector<8x128xf32>
    %88 = arith.mulf %87, %19 : vector<8x128xf32>
    %89 = arith.subf %28, %88 : vector<8x128xf32>
    %90 = arith.mulf %87, %22 : vector<8x128xf32>
    %91 = arith.subf %31, %90 : vector<8x128xf32>
    %92 = arith.mulf %87, %25 : vector<8x128xf32>
    %93 = arith.subf %34, %92 : vector<8x128xf32>
    %94 = arith.mulf %22, %86 : vector<8x128xf32>
    %95 = arith.mulf %94, %22 : vector<8x128xf32>
    %96 = arith.subf %37, %95 : vector<8x128xf32>
    %97 = arith.mulf %94, %25 : vector<8x128xf32>
    %98 = arith.subf %40, %97 : vector<8x128xf32>
    %99 = arith.mulf %25, %86 : vector<8x128xf32>
    %100 = arith.mulf %99, %25 : vector<8x128xf32>
    %101 = arith.subf %43, %100 : vector<8x128xf32>
    %102 = arith.mulf %16, %89 : vector<8x128xf32>
    %cst_20 = arith.constant 1.000000e+00 : f32
    %103 = vector.broadcast %cst_20 : f32 to vector<8x128xf32>
    %104 = arith.divf %103, %89 : vector<8x128xf32>
    %105 = arith.mulf %91, %104 : vector<8x128xf32>
    %106 = arith.mulf %105, %91 : vector<8x128xf32>
    %107 = arith.subf %96, %106 : vector<8x128xf32>
    %108 = arith.mulf %105, %93 : vector<8x128xf32>
    %109 = arith.subf %98, %108 : vector<8x128xf32>
    %110 = arith.mulf %93, %104 : vector<8x128xf32>
    %111 = arith.mulf %110, %93 : vector<8x128xf32>
    %112 = arith.subf %101, %111 : vector<8x128xf32>
    %113 = arith.mulf %102, %107 : vector<8x128xf32>
    %cst_21 = arith.constant 1.000000e+00 : f32
    %114 = vector.broadcast %cst_21 : f32 to vector<8x128xf32>
    %115 = arith.divf %114, %107 : vector<8x128xf32>
    %116 = arith.mulf %109, %115 : vector<8x128xf32>
    %117 = arith.mulf %116, %109 : vector<8x128xf32>
    %118 = arith.subf %112, %117 : vector<8x128xf32>
    %119 = arith.mulf %113, %118 : vector<8x128xf32>
    %120 = math.log %119 : vector<8x128xf32>
    %121 = arith.subf %84, %120 : vector<8x128xf32>
    %cst_22 = arith.constant 5.000000e-01 : f32
    %122 = vector.broadcast %cst_22 : f32 to vector<8x128xf32>
    %123 = arith.mulf %122, %121 : vector<8x128xf32>
    %124 = arith.index_cast %1 : i32 to index
    %c0_23 = arith.constant 0 : index
    %125 = vector.load %arg2[%124, %c0_23] : memref<8x128xf32, #tpu.memory_space<vmem>>, vector<8x128xf32>
    tpu.vector_store %arg2[%124, %c0_23], %123 {strides = array<i32>} : memref<8x128xf32, #tpu.memory_space<vmem>>, vector<8x128xf32>,
    %c1_i32 = arith.constant 1 : i32
    return
  }
  func.func @transform_0(%arg0: i32) -> (i32, i32, i32) {
    %c0_i32 = arith.constant 0 : i32
    %c0_i32_0 = arith.constant 0 : i32
    %c0_i32_1 = arith.constant 0 : i32
    return %c0_i32, %arg0, %c0_i32_0 : i32, i32, i32
  }
  func.func @transform_1(%arg0: i32) -> (i32, i32) {
    %c0_i32 = arith.constant 0 : i32
    %c0_i32_0 = arith.constant 0 : i32
    return %arg0, %c0_i32 : i32, i32
  }
}

</mosaic_0001>

<llo_original>
// kernel: tpu_custom_call.1
$region0: #{tpu_custom_call.1}
  #allocation0 [shape = 'u32[]', space=smem, size = 0x4, offset = 0x4, fixed_abs, tag = 'smem constant byte address 0x4 - core index']
  #allocation1 [shape = 'u32[72,128]{1,0:T(1,128)}', space=vmem, size = 0x9000, scoped, tag = 'internal scratch']
  %s0 = inlined_call_operand.hbm [shape: f32[14,8,128], index: 0, kind: input, shape index: {}]
  %s1 = inlined_call_operand.hbm [shape: f32[8,128], index: 1, kind: output, shape index: {}]
  %s2 = sld [smem:[#allocation0]]
  $region18: #{tpu_custom_call.1} parent=0
    _
  %s4 = ssub.s32 1, %s2
  %s5 = scalar_select 0, %s4, %s2
  $region1: #{tpu_custom_call.1} parent=0
    #allocation2 [shape = 'u8[57344]{0}', space=vmem, size = 0xe000, scoped, tag = 'input window, operand 0, single buffered']
    #allocation3 [shape = 's32[1]{0}', space=sflag, size = 0x4, scoped, tag = 'scoped memory for tpu_custom_call.1']
    #allocation4 [shape = 's32[1]{0}', space=sflag, size = 0x4, scoped, tag = 'scoped memory for tpu_custom_call.1']
    #allocation5 [shape = 'u8[4096]{0}', space=vmem, size = 0x1000, scoped, tag = 'output window, operand 0, single buffered']
    %6 = vsyncpa [#allocation3], 0
    %7 = vsyncpa [#allocation4], 0
    // Predicated region
    $region2: #{tpu_custom_call.1} parent=1 // pred_check
      _
    $region3: #{tpu_custom_call.1} parent=1 // pred_check_branch
      %9 = sbr.rel (0) target = $region5
    $region4: #{tpu_custom_call.1} parent=1 // pred_region
      %11 = vsyncadd [#allocation3], 0
      %s12 = sshll.u32 %s0, 4
      %s13 = int_to_ptr.hbm [resolvable:$true] %s12
      %s14 = sshll.u32 [#allocation2], 4
      %s15 = int_to_ptr.vmem [resolvable:$true] %s14
      %20 = dma.hbm_to_vmem [thread:$0]  %s13, 1792, %s15, [#allocation3], 128, 128, 8
    $region5: #{tpu_custom_call.1} parent=1 // pred_fallthru
      _
    // Predicated region
    $region6: #{tpu_custom_call.1} parent=1 // pred_check
      _
    $region7: #{tpu_custom_call.1} parent=1 // pred_check_branch
      %22 = sbr.rel (0) target = $region9
    $region8: #{tpu_custom_call.1} parent=1 // pred_region
      %24 = dma.done [#allocation3], 1792
    $region9: #{tpu_custom_call.1} parent=1 // pred_fallthru
      _
    %v25 = vld [vmem:[#allocation2] sm:$0xff]
    %s26 = sadd.s32 0, 8
    %s27 = scalar_lea.vmem [#allocation2], %s26
    %v28 = vld [vmem:[%s27] sm:$0xff]
    %s29 = sadd.s32 0, 16
    %s30 = scalar_lea.vmem [#allocation2], %s29
    %v31 = vld [vmem:[%s30] sm:$0xff]
    %s32 = sadd.s32 0, 24
    %s33 = scalar_lea.vmem [#allocation2], %s32
    %v34 = vld [vmem:[%s33] sm:$0xff]
    %s35 = sadd.s32 0, 32
    %s36 = scalar_lea.vmem [#allocation2], %s35
    %v37 = vld [vmem:[%s36] sm:$0xff]
    %s38 = sadd.s32 0, 40
    %s39 = scalar_lea.vmem [#allocation2], %s38
    %v40 = vld [vmem:[%s39] sm:$0xff]
    %s41 = sadd.s32 0, 48
    %s42 = scalar_lea.vmem [#allocation2], %s41
    %v43 = vld [vmem:[%s42] sm:$0xff]
    %s44 = sadd.s32 0, 56
    %s45 = scalar_lea.vmem [#allocation2], %s44
    %v46 = vld [vmem:[%s45] sm:$0xff]
    %s47 = sadd.s32 0, 64
    %s48 = scalar_lea.vmem [#allocation2], %s47
    %v49 = vld [vmem:[%s48] sm:$0xff]
    %s50 = sadd.s32 0, 72
    %s51 = scalar_lea.vmem [#allocation2], %s50
    %v52 = vld [vmem:[%s51] sm:$0xff]
    %s53 = sadd.s32 0, 80
    %s54 = scalar_lea.vmem [#allocation2], %s53
    %v55 = vld [vmem:[%s54] sm:$0xff]
    %s56 = sadd.s32 0, 88
    %s57 = scalar_lea.vmem [#allocation2], %s56
    %v58 = vld [vmem:[%s57] sm:$0xff]
    %s59 = sadd.s32 0, 96
    %s60 = scalar_lea.vmem [#allocation2], %s59
    %v61 = vld [vmem:[%s60] sm:$0xff]
    %s62 = sadd.s32 0, 104
    %s63 = scalar_lea.vmem [#allocation2], %s62
    %v64 = vld [vmem:[%s63] sm:$0xff]
    %v65 = vmul.f32 %v25, %v25
    %v66 = vmul.f32 %v65, %v37
    %v67 = vmul.f32 %v25, %v28
    %v68 = vmul.f32 %v67, %v40
    %v69 = vmul.f32 %v68, 2.0
    %v70 = vadd.f32 %v66, %v69
    %v71 = vmul.f32 %v25, %v31
    %v72 = vmul.f32 %v71, %v43
    %v73 = vmul.f32 %v72, 2.0
    %v74 = vadd.f32 %v70, %v73
    %v75 = vmul.f32 %v25, %v34
    %v76 = vmul.f32 %v75, %v46
    %v77 = vmul.f32 %v76, 2.0
    %v78 = vadd.f32 %v74, %v77
    %v79 = vmul.f32 %v28, %v28
    %v80 = vmul.f32 %v79, %v49
    %v81 = vadd.f32 %v78, %v80
    %v82 = vmul.f32 %v28, %v31
    %v83 = vmul.f32 %v82, %v52
    %v84 = vmul.f32 %v83, 2.0
    %v85 = vadd.f32 %v81, %v84
    %v86 = vmul.f32 %v28, %v34
    %v87 = vmul.f32 %v86, %v55
    %v88 = vmul.f32 %v87, 2.0
    %v89 = vadd.f32 %v85, %v88
    %v90 = vmul.f32 %v31, %v31
    %v91 = vmul.f32 %v90, %v58
    %v92 = vadd.f32 %v89, %v91
    %v93 = vmul.f32 %v31, %v34
    %v94 = vmul.f32 %v93, %v61
    %v95 = vmul.f32 %v94, 2.0
    %v96 = vadd.f32 %v92, %v95
    %v97 = vmul.f32 %v34, %v34
    %v98 = vmul.f32 %v97, %v64
    %v99 = vadd.f32 %v96, %v98
    %v100 = vrcp.pop %v37
    %v101 = vmul.f32 %v37, %v100
    %v102 = vsub.f32 1.0, %v101
    %v103 = vmul.f32 %v100, %v102
    %v104 = vadd.f32 %v100, %v103
    %vm105 = vweird.f32 %v37
    %vm106 = vweird.f32 %v100
    %vm107 = vmor %vm105, %vm106
    %v108 = vsel %vm107, %v100, %v104
    %v109 = vand.u32 2147483647, %v37
    %vm110 = vcmp.eq.f32.partialorder %v109, 8.507059e+37
    %v111 = vand.u32 %v37, 2147483648
    %v112 = vor.u32 1.1754944e-38, %v111
    %v113 = vsel %vm110, %v112, %v108
    %v114 = vmul.f32 1.0, %v113
    %v115 = vmul.f32 %v40, %v114
    %v116 = vmul.f32 %v115, %v40
    %v117 = vsub.f32 %v49, %v116
    %v118 = vmul.f32 %v115, %v43
    %v119 = vsub.f32 %v52, %v118
    %v120 = vmul.f32 %v115, %v46
    %v121 = vsub.f32 %v55, %v120
    %v122 = vmul.f32 %v43, %v114
    %v123 = vmul.f32 %v122, %v43
    %v124 = vsub.f32 %v58, %v123
    %v125 = vmul.f32 %v122, %v46
    %v126 = vsub.f32 %v61, %v125
    %v127 = vmul.f32 %v46, %v114
    %v128 = vmul.f32 %v127, %v46
    %v129 = vsub.f32 %v64, %v128
    %v130 = vmul.f32 %v37, %v117
    %v131 = vrcp.pop %v117
    %v132 = vmul.f32 %v117, %v131
    %v133 = vsub.f32 1.0, %v132
    %v134 = vmul.f32 %v131, %v133
    %v135 = vadd.f32 %v131, %v134
    %vm136 = vweird.f32 %v117
    %vm137 = vweird.f32 %v131
    %vm138 = vmor %vm136, %vm137
    %v139 = vsel %vm138, %v131, %v135
    %v140 = vand.u32 2147483647, %v117
    %vm141 = vcmp.eq.f32.partialorder %v140, 8.507059e+37
    %v142 = vand.u32 %v117, 2147483648
    %v143 = vor.u32 1.1754944e-38, %v142
    %v144 = vsel %vm141, %v143, %v139
    %v145 = vmul.f32 1.0, %v144
    %v146 = vmul.f32 %v119, %v145
    %v147 = vmul.f32 %v146, %v119
    %v148 = vsub.f32 %v124, %v147
    %v149 = vmul.f32 %v146, %v121
    %v150 = vsub.f32 %v126, %v149
    %v151 = vmul.f32 %v121, %v145
    %v152 = vmul.f32 %v151, %v121
    %v153 = vsub.f32 %v129, %v152
    %v154 = vmul.f32 %v130, %v148
    %v155 = vrcp.pop %v148
    %v156 = vmul.f32 %v148, %v155
    %v157 = vsub.f32 1.0, %v156
    %v158 = vmul.f32 %v155, %v157
    %v159 = vadd.f32 %v155, %v158
    %vm160 = vweird.f32 %v148
    %vm161 = vweird.f32 %v155
    %vm162 = vmor %vm160, %vm161
    %v163 = vsel %vm162, %v155, %v159
    %v164 = vand.u32 2147483647, %v148
    %vm165 = vcmp.eq.f32.partialorder %v164, 8.507059e+37
    %v166 = vand.u32 %v148, 2147483648
    %v167 = vor.u32 1.1754944e-38, %v166
    %v168 = vsel %vm165, %v167, %v163
    %v169 = vmul.f32 1.0, %v168
    %v170 = vmul.f32 %v150, %v169
    %v171 = vmul.f32 %v170, %v150
    %v172 = vsub.f32 %v153, %v171
    %v173 = vmul.f32 %v154, %v172
    %v174 = vlog2.pop %v173
    %v175 = vmul.f32 %v174, 0.6931472
    %v176 = vsub.f32 %v99, %v175
    %v177 = vmul.f32 %v176, 0.5
    %178 = vst [vmem:[#allocation5] sm:$0xff] %v177
    // Predicated region
    $region10: #{tpu_custom_call.1} parent=1 // pred_check
      _
    $region11: #{tpu_custom_call.1} parent=1 // pred_check_branch
      %180 = sbr.rel (0) target = $region13
    $region12: #{tpu_custom_call.1} parent=1 // pred_region
      %182 = vsyncadd [#allocation4], 0
      %s184 = sshll.u32 [#allocation5], 4
      %s185 = int_to_ptr.vmem [resolvable:$true] %s184
      %s186 = sshll.u32 %s1, 4
      %s187 = int_to_ptr.hbm [resolvable:$true] %s186
      %189 = dma.vmem_to_hbm [thread:$0]  %s185, 128, %s187, [#allocation4]
    $region13: #{tpu_custom_call.1} parent=1 // pred_fallthru
      _
    // Predicated region
    $region14: #{tpu_custom_call.1} parent=1 // pred_check
      _
    $region15: #{tpu_custom_call.1} parent=1 // pred_check_branch
      %191 = sbr.rel (0) target = $region17
    $region16: #{tpu_custom_call.1} parent=1 // pred_region
      %193 = dma.done [#allocation4], 128
    $region17: #{tpu_custom_call.1} parent=1 // pred_fallthru
      _
    %194 = vsyncpa [#allocation3], 1
    %195 = vsyncpa [#allocation4], 1

</llo_original>
